<compile_context>
chip_gen: v7x
topology: tpu7x:2x2x1
jax: 0.10.0
libtpu: 0.0.40
codegen_flags: <defaults>
</compile_context>

<pallas_src>
import functools

import jax
import jax.numpy as jnp
from jax.experimental import pallas as pl
from jax.experimental.pallas import tpu as pltpu


def ckdnet_kernel(x_ref, w1_ref, b1_ref, w2_ref, b2_ref, w3_ref, b3_ref, o_ref):
    """One batch tile of the fused 3-layer MLP.

    x_ref : [F_in, TILE_B]   (compute dtype; batch on lanes)
    wN_ref: [F_out, F_in]    (PyTorch nn.Linear layout; compute dtype)
    bN_ref: [F_out, 1]       (f32)
    o_ref : [1, TILE_B]      (f32, lane-dense output)
    """
    x = x_ref[...]
    # fc1 + ReLU  (MXU accumulates in f32; bias/ReLU epilogue in f32 on VPU)
    h1 = jnp.dot(w1_ref[...], x, preferred_element_type=jnp.float32)
    h1 = jnp.maximum(h1 + b1_ref[...], 0.0)                  # [16, TILE_B]
    # fc2 + ReLU
    h2 = jnp.dot(w2_ref[...], h1.astype(w2_ref.dtype),
                 preferred_element_type=jnp.float32)
    h2 = jnp.maximum(h2 + b2_ref[...], 0.0)                  # [8, TILE_B]
    # fc3 + Sigmoid
    h3 = jnp.dot(w3_ref[...], h2.astype(w3_ref.dtype),
                 preferred_element_type=jnp.float32)
    o_ref[...] = jax.nn.sigmoid(h3 + b3_ref[...])            # [1, TILE_B]


@functools.partial(jax.jit, static_argnames=("tile_b", "compute_dtype"))
def ckdnet_forward(x, params, *, tile_b=512, compute_dtype=jnp.float32):
    """Fused CKDNet forward.

    x: [B, input_size] float32 (PyTorch convention)
    params: w1 [16,in], b1 [16,1], w2 [8,16], b2 [8,1], w3 [1,8], b3 [1,1]
    returns: [B, 1] float32
    """
    B, f_in = x.shape
    f1 = params["w1"].shape[0]
    f2 = params["w2"].shape[0]
    f3 = params["w3"].shape[0]

    # Tile the batch axis; for small B collapse to a single full-array tile.
    tile_b = min(tile_b, B)
    n_tiles = pl.cdiv(B, tile_b)
    b_pad = n_tiles * tile_b

    # Batch-on-lane layout: [F_in, B]; zero-pad batch to a tile multiple.
    xT = x.T.astype(compute_dtype)
    if b_pad != B:
        xT = jnp.pad(xT, ((0, 0), (0, b_pad - B)))

    w1 = params["w1"].astype(compute_dtype)
    w2 = params["w2"].astype(compute_dtype)
    w3 = params["w3"].astype(compute_dtype)
    b1 = params["b1"].astype(jnp.float32)
    b2 = params["b2"].astype(jnp.float32)
    b3 = params["b3"].astype(jnp.float32)

    # Weights/biases: constant index_map -> DMA'd once, VMEM-resident across
    # all grid iterations (tiny: a few KiB total).
    const = lambda shape: pl.BlockSpec(shape, lambda i: (0, 0))

    out = pl.pallas_call(
        ckdnet_kernel,
        out_shape=jax.ShapeDtypeStruct((1, b_pad), jnp.float32),
        grid=(n_tiles,),
        in_specs=[
            pl.BlockSpec((f_in, tile_b), lambda i: (0, i)),   # x batch tile
            const((f1, f_in)), const((f1, 1)),                # fc1
            const((f2, f1)), const((f2, 1)),                  # fc2
            const((f3, f2)), const((f3, 1)),                  # fc3
        ],
        out_specs=pl.BlockSpec((1, tile_b), lambda i: (0, i)),
        compiler_params=pltpu.CompilerParams(
            # Batch tiles are independent -> shard across TCs on v7x megacore.
            dimension_semantics=("parallel",),
        ),
    )(xT, w1, b1, w2, b2, w3, b3)

    # Back to the module's [B, 1] convention (drop batch padding).
    return out[:, :B].T


def init_params(key, input_size=3):
    """Deterministic init mimicking nn.Linear (uniform +/- 1/sqrt(fan_in)).

    Weights are kept in PyTorch's [out_features, in_features] layout; biases
    are stored as columns [out_features, 1] for the batch-on-lane kernel.
    """
    def linear(key, fan_in, fan_out):
        kw, kb = jax.random.split(key)
        bound = 1.0 / jnp.sqrt(jnp.float32(fan_in))
        w = jax.random.uniform(kw, (fan_out, fan_in), jnp.float32, -bound, bound)
        b = jax.random.uniform(kb, (fan_out, 1), jnp.float32, -bound, bound)
        return w, b

    k1, k2, k3 = jax.random.split(key, 3)
    w1, b1 = linear(k1, input_size, 16)
    w2, b2 = linear(k2, 16, 8)
    w3, b3 = linear(k3, 8, 1)
    return {"w1": w1, "b1": b1, "w2": w2, "b2": b2, "w3": w3, "b3": b3}


def ckdnet_ref(x, p):
    """Pure-JAX reference (PyTorch semantics)."""
    h1 = jax.nn.relu(x @ p["w1"].T + p["b1"].T)
    h2 = jax.nn.relu(h1 @ p["w2"].T + p["b2"].T)
    return jax.nn.sigmoid(h2 @ p["w3"].T + p["b3"].T)


if __name__ == "__main__":
    key = jax.random.PRNGKey(0)
    kx, kp = jax.random.split(key)

    input_size = 3
    params = init_params(kp, input_size=input_size)

    # Main case: batch big enough to exercise the batch grid / pipelining.
    batch = 2048
    x = jax.random.normal(kx, (batch, input_size), jnp.float32)
    ref = ckdnet_ref(x, params)

    out_f32 = jax.block_until_ready(
        ckdnet_forward(x, params, tile_b=512, compute_dtype=jnp.float32))
    assert out_f32.shape == (batch, 1)
    assert jnp.allclose(out_f32, ref, atol=1e-5, rtol=1e-5), "f32 mismatch"

    # bf16 inputs/weights (f32 accumulation + f32 epilogue): halves x DMA
    # traffic; tolerance relaxed accordingly.
    out_bf16 = jax.block_until_ready(
        ckdnet_forward(x, params, tile_b=512, compute_dtype=jnp.bfloat16))
    assert jnp.allclose(out_bf16, ref, atol=2e-2, rtol=2e-2), "bf16 mismatch"

    # Ragged batch (exercises zero-padding of the last batch tile).
    x_odd = jax.random.normal(kx, (700, input_size), jnp.float32)
    out_odd = jax.block_until_ready(
        ckdnet_forward(x_odd, params, tile_b=512, compute_dtype=jnp.float32))
    assert out_odd.shape == (700, 1)
    assert jnp.allclose(out_odd, ckdnet_ref(x_odd, params),
                        atol=1e-5, rtol=1e-5), "ragged mismatch"

    print("KERNEL_OK")
</pallas_src>

<mosaic_0001>
module attributes {stable_mosaic.version = 11 : i64} {
  func.func @ckdnet_kernel(%arg0: i32, %arg1: memref<3x512xf32, #tpu.memory_space<vmem>>, %arg2: memref<16x3xf32, #tpu.memory_space<vmem>>, %arg3: memref<16x1xf32, #tpu.memory_space<vmem>>, %arg4: memref<8x16xf32, #tpu.memory_space<vmem>>, %arg5: memref<8x1xf32, #tpu.memory_space<vmem>>, %arg6: memref<1x8xf32, #tpu.memory_space<vmem>>, %arg7: memref<1x1xf32, #tpu.memory_space<vmem>>, %arg8: memref<1x512xf32, #tpu.memory_space<vmem>>) attributes {dimension_semantics = [#tpu.dimension_semantics<parallel>], iteration_bounds = array<i64: 4>, scalar_prefetch = 0 : i64, scratch_operands = 0 : i64, tpu.core_type = #tpu.core_type<tc>, window_params = [{transform_indices = @transform_0, window_bounds = array<i64: 3, 512>}, {pipeline_mode = #tpu.pipeline_mode<synchronous>, transform_indices = @transform_1, window_bounds = array<i64: 16, 3>}, {pipeline_mode = #tpu.pipeline_mode<synchronous>, transform_indices = @transform_2, window_bounds = array<i64: 16, 1>}, {pipeline_mode = #tpu.pipeline_mode<synchronous>, transform_indices = @transform_3, window_bounds = array<i64: 8, 16>}, {pipeline_mode = #tpu.pipeline_mode<synchronous>, transform_indices = @transform_4, window_bounds = array<i64: 8, 1>}, {pipeline_mode = #tpu.pipeline_mode<synchronous>, transform_indices = @transform_5, window_bounds = array<i64: 1, 8>}, {pipeline_mode = #tpu.pipeline_mode<synchronous>, transform_indices = @transform_6, window_bounds = array<i64: 1, 1>}, {transform_indices = @transform_7, window_bounds = array<i64: 1, 512>}]} {
    %c0 = arith.constant 0 : index
    %c0_0 = arith.constant 0 : index
    %0 = vector.load %arg1[%c0, %c0_0] : memref<3x512xf32, #tpu.memory_space<vmem>>, vector<3x512xf32>
    %c0_1 = arith.constant 0 : index
    %c0_2 = arith.constant 0 : index
    %1 = vector.load %arg2[%c0_1, %c0_2] : memref<16x3xf32, #tpu.memory_space<vmem>>, vector<16x3xf32>
    %cst = arith.constant dense<0.000000e+00> : vector<16x512xf32>
    %2 = tpu.matmul %1, %0, %cst {dimension_numbers = #tpu.dot_dimension_numbers<[1], [0], [0], [1], [0, 0, 1, 1], [], []>} : vector<16x3xf32>, vector<3x512xf32>, vector<16x512xf32> -> vector<16x512xf32>
    %c0_3 = arith.constant 0 : index
    %c0_4 = arith.constant 0 : index
    %3 = vector.load %arg3[%c0_3, %c0_4] : memref<16x1xf32, #tpu.memory_space<vmem>>, vector<16x1xf32>
    %4 = vector.broadcast %3 : vector<16x1xf32> to vector<16x512xf32>
    %5 = arith.addf %2, %4 : vector<16x512xf32>
    %cst_5 = arith.constant 0.000000e+00 : f32
    %6 = vector.broadcast %cst_5 : f32 to vector<16x512xf32>
    %7 = arith.maximumf %5, %6 : vector<16x512xf32>
    %c0_6 = arith.constant 0 : index
    %c0_7 = arith.constant 0 : index
    %8 = vector.load %arg4[%c0_6, %c0_7] : memref<8x16xf32, #tpu.memory_space<vmem>>, vector<8x16xf32>
    %cst_8 = arith.constant dense<0.000000e+00> : vector<8x512xf32>
    %9 = tpu.matmul %8, %7, %cst_8 {dimension_numbers = #tpu.dot_dimension_numbers<[1], [0], [0], [1], [0, 0, 1, 1], [], []>} : vector<8x16xf32>, vector<16x512xf32>, vector<8x512xf32> -> vector<8x512xf32>
    %c0_9 = arith.constant 0 : index
    %c0_10 = arith.constant 0 : index
    %10 = vector.load %arg5[%c0_9, %c0_10] : memref<8x1xf32, #tpu.memory_space<vmem>>, vector<8x1xf32>
    %11 = vector.broadcast %10 : vector<8x1xf32> to vector<8x512xf32>
    %12 = arith.addf %9, %11 : vector<8x512xf32>
    %cst_11 = arith.constant 0.000000e+00 : f32
    %13 = vector.broadcast %cst_11 : f32 to vector<8x512xf32>
    %14 = arith.maximumf %12, %13 : vector<8x512xf32>
    %c0_12 = arith.constant 0 : index
    %c0_13 = arith.constant 0 : index
    %15 = vector.load %arg6[%c0_12, %c0_13] : memref<1x8xf32, #tpu.memory_space<vmem>>, vector<1x8xf32>
    %cst_14 = arith.constant dense<0.000000e+00> : vector<1x512xf32>
    %16 = tpu.matmul %15, %14, %cst_14 {dimension_numbers = #tpu.dot_dimension_numbers<[1], [0], [0], [1], [0, 0, 1, 1], [], []>} : vector<1x8xf32>, vector<8x512xf32>, vector<1x512xf32> -> vector<1x512xf32>
    %c0_15 = arith.constant 0 : index
    %c0_16 = arith.constant 0 : index
    %17 = vector.load %arg7[%c0_15, %c0_16] : memref<1x1xf32, #tpu.memory_space<vmem>>, vector<1x1xf32>
    %18 = vector.broadcast %17 : vector<1x1xf32> to vector<1x512xf32>
    %19 = arith.addf %16, %18 : vector<1x512xf32>
    %20 = arith.negf %19 : vector<1x512xf32>
    %21 = math.exp %20 : vector<1x512xf32>
    %cst_17 = arith.constant 1.000000e+00 : f32
    %22 = vector.broadcast %cst_17 : f32 to vector<1x512xf32>
    %23 = arith.addf %22, %21 : vector<1x512xf32>
    %24 = arith.divf %22, %23 : vector<1x512xf32>
    %c0_18 = arith.constant 0 : index
    %c0_19 = arith.constant 0 : index
    %25 = vector.load %arg8[%c0_18, %c0_19] : memref<1x512xf32, #tpu.memory_space<vmem>>, vector<1x512xf32>
    tpu.vector_store %arg8[%c0_18, %c0_19], %24 {strides = array<i32>} : memref<1x512xf32, #tpu.memory_space<vmem>>, vector<1x512xf32>,
    return
  }
  func.func @transform_0(%arg0: i32) -> (i32, i32) {
    %c0_i32 = arith.constant 0 : i32
    %c0_i32_0 = arith.constant 0 : i32
    return %c0_i32, %arg0 : i32, i32
  }
  func.func @transform_1(%arg0: i32) -> (i32, i32) {
    %c0_i32 = arith.constant 0 : i32
    %c0_i32_0 = arith.constant 0 : i32
    %c0_i32_1 = arith.constant 0 : i32
    return %c0_i32, %c0_i32_0 : i32, i32
  }
  func.func @transform_2(%arg0: i32) -> (i32, i32) {
    %c0_i32 = arith.constant 0 : i32
    %c0_i32_0 = arith.constant 0 : i32
    %c0_i32_1 = arith.constant 0 : i32
    return %c0_i32, %c0_i32_0 : i32, i32
  }
  func.func @transform_3(%arg0: i32) -> (i32, i32) {
    %c0_i32 = arith.constant 0 : i32
    %c0_i32_0 = arith.constant 0 : i32
    %c0_i32_1 = arith.constant 0 : i32
    return %c0_i32, %c0_i32_0 : i32, i32
  }
  func.func @transform_4(%arg0: i32) -> (i32, i32) {
    %c0_i32 = arith.constant 0 : i32
    %c0_i32_0 = arith.constant 0 : i32
    %c0_i32_1 = arith.constant 0 : i32
    return %c0_i32, %c0_i32_0 : i32, i32
  }
  func.func @transform_5(%arg0: i32) -> (i32, i32) {
    %c0_i32 = arith.constant 0 : i32
    %c0_i32_0 = arith.constant 0 : i32
    %c0_i32_1 = arith.constant 0 : i32
    return %c0_i32, %c0_i32_0 : i32, i32
  }
  func.func @transform_6(%arg0: i32) -> (i32, i32) {
    %c0_i32 = arith.constant 0 : i32
    %c0_i32_0 = arith.constant 0 : i32
    %c0_i32_1 = arith.constant 0 : i32
    return %c0_i32, %c0_i32_0 : i32, i32
  }
  func.func @transform_7(%arg0: i32) -> (i32, i32) {
    %c0_i32 = arith.constant 0 : i32
    %c0_i32_0 = arith.constant 0 : i32
    return %c0_i32, %arg0 : i32, i32
  }
}

</mosaic_0001>

<llo_original>
// kernel: ckdnet_forward.1
$region0: #{ckdnet_forward.1}
  #allocation0 [shape = 'u32[]', space=smem, size = 0x4, offset = 0x4, fixed_abs, tag = 'smem constant byte address 0x4 - core index']
  #allocation1 [shape = 'u32[144,128]{1,0:T(1,128)}', space=vmem, size = 0x12000, scoped, tag = 'internal scratch']
  #allocation2 [shape = 'f32[1,1]{1,0:T(1,128)S(1)}', space=vmem, size = 0x200, scoped, tag = 'scoped memory for ckdnet_forward.1']
  %s0 = inlined_call_operand.hbm [shape: f32[3,2048], index: 0, kind: input, shape index: {}]
  %s1 = inlined_call_operand.vmem [shape: f32[16,3], index: 1, kind: input, shape index: {}]
  %s2 = inlined_call_operand.vmem [shape: f32[16,1], index: 2, kind: input, shape index: {}]
  %s3 = inlined_call_operand.vmem [shape: f32[8,16], index: 3, kind: input, shape index: {}]
  %s4 = inlined_call_operand.vmem [shape: f32[8,1], index: 4, kind: input, shape index: {}]
  %s5 = inlined_call_operand.vmem [shape: f32[1,8], index: 5, kind: input, shape index: {}]
  %s6 = inlined_call_operand.<no memory space> [shape: f32[1,1], index: 6, kind: input, shape index: {}]
  %s7 = inlined_call_operand.hbm [shape: f32[1,2048], index: 7, kind: output, shape index: {}]
  %s8 = sld [smem:[#allocation0]]
  $region65: #{ckdnet_forward.1} parent=0
    _
  %s10 = ssub.s32 1, %s8
  %s11 = scalar_select 0, %s10, %s8
  %v12 = vstv %s6
  %13 = vst [vmem:[#allocation2] sm:$0x1] %v12
  $region1: #{ckdnet_forward.1} parent=0
    #allocation3 [shape = 'u8[16384]{0}', space=vmem, size = 0x4000, scoped, tag = 'input window, operand 0']
    #allocation4 [shape = 's32[2]{0}', space=sflag, size = 0x8, scoped, tag = 'scoped memory for ckdnet_forward.1']
    #allocation5 [shape = 's32[2]{0}', space=sflag, size = 0x8, scoped, tag = 'scoped memory for ckdnet_forward.1']
    #allocation6 [shape = 'u8[4096]{0}', space=vmem, size = 0x1000, scoped, tag = 'output window, operand 0']
    %14 = vsyncpa [#allocation4], 0
    %s15 = scalar_lea.sflag [#allocation4], 1
    %16 = vsyncpa %s15, 0
    %17 = vsyncpa [#allocation5], 0
    %s18 = scalar_lea.sflag [#allocation5], 1
    %19 = vsyncpa %s18, 0
    loop: start=0, step=1, limit=6
    $region2: #{ckdnet_forward.1} parent=1 // loop_pre_header
      _
    $region3: #{ckdnet_forward.1} parent=1 // loop_header
      %s21 = sphi 0, %s25
      %p22 = scmp.ge.s32.totalorder %s21, 6
      %s31 = sphi 0, %s33
      %s34 = sphi 0, %s31
      %s35 = sphi 0, %s34
      %s51 = sphi 0, %s35
      %s55 = sphi 0, %s55
      %s57 = sphi 0, %s55
      %s58 = sphi 0, %s57
      %s72 = sphi 0, %s58
      %s76 = sphi 0, %s76
      %s78 = sphi 0, %s76
      %s79 = sphi 0, %s78
      %s93 = sphi 0, %s79
      %s97 = sphi 0, %s97
      %s99 = sphi 0, %s97
      %s100 = sphi 0, %s99
      %s114 = sphi 0, %s100
      %s118 = sphi 0, %s118
      %s120 = sphi 0, %s118
      %s121 = sphi 0, %s120
      %s135 = sphi 0, %s121
      %s139 = sphi 0, %s139
      %s141 = sphi 0, %s139
      %s142 = sphi 0, %s141
      %s156 = sphi 0, %s142
      %s160 = sphi 0, %s160
      %s162 = sphi 0, %s160
      %s163 = sphi 0, %s162
      %s177 = sphi 0, %s163
      %s183 = sphi 0, %s185
      %s186 = sphi 0, %s183
      %s187 = sphi 0, %s186
      %s203 = sphi 0, %s187
    $region4: #{ckdnet_forward.1} parent=1 // loop_header_branch
      %24 = sbr.rel (%p22) target = $region8
    $region5: #{ckdnet_forward.1} parent=1 // loop_body
      %s26 = ssub.s32 %s21, 1
      %s27 = ssub.s32 %s21, 2
      %s28 = sadd.s32 %s21, 1
      %s29 = ssub.s32 %s21, %s28
      %p30 = scmp.eq.s32.totalorder %s29, 0
      %s32 = sadd.s32 %s31, 1
      %s33 = scalar_select %p30, %s31, %s32
      %p36 = pneg %p30
      %p37 = scmp.eq.s32.totalorder %s21, 3
      %p38 = por %p36, %p37
      %p39 = scmp.ne.s32.totalorder %s31, %s34
      %p40 = scmp.eq.s32.totalorder %s21, 0
      %p41 = por %p39, %p40
      %p42 = scmp.ne.s32.totalorder %s31, %s34
      %p43 = scmp.eq.s32.totalorder %s26, 3
      %p44 = por %p42, %p43
      %p45 = scmp.ne.s32.totalorder %s34, %s35
      %p46 = scmp.eq.s32.totalorder %s26, 0
      %p47 = por %p45, %p46
      %p48 = scmp.ne.s32.totalorder %s34, %s35
      %p49 = scmp.eq.s32.totalorder %s27, 3
      %p50 = por %p48, %p49
      %p52 = scmp.ne.s32.totalorder %s35, %s51
      %p53 = scmp.eq.s32.totalorder %s27, 0
      %p54 = por %p52, %p53
      %s56 = sadd.s32 %s55, 1
      %p59 = scmp.eq.s32.totalorder %s21, 3
      %p60 = scmp.ne.s32.totalorder %s55, %s57
      %p61 = scmp.eq.s32.totalorder %s21, 0
      %p62 = por %p60, %p61
      %p63 = scmp.ne.s32.totalorder %s55, %s57
      %p64 = scmp.eq.s32.totalorder %s26, 3
      %p65 = por %p63, %p64
      %p66 = scmp.ne.s32.totalorder %s57, %s58
      %p67 = scmp.eq.s32.totalorder %s26, 0
      %p68 = por %p66, %p67
      %p69 = scmp.ne.s32.totalorder %s57, %s58
      %p70 = scmp.eq.s32.totalorder %s27, 3
      %p71 = por %p69, %p70
      %p73 = scmp.ne.s32.totalorder %s58, %s72
      %p74 = scmp.eq.s32.totalorder %s27, 0
      %p75 = por %p73, %p74
      %s77 = sadd.s32 %s76, 1
      %p80 = scmp.eq.s32.totalorder %s21, 3
      %p81 = scmp.ne.s32.totalorder %s76, %s78
      %p82 = scmp.eq.s32.totalorder %s21, 0
      %p83 = por %p81, %p82
      %p84 = scmp.ne.s32.totalorder %s76, %s78
      %p85 = scmp.eq.s32.totalorder %s26, 3
      %p86 = por %p84, %p85
      %p87 = scmp.ne.s32.totalorder %s78, %s79
      %p88 = scmp.eq.s32.totalorder %s26, 0
      %p89 = por %p87, %p88
      %p90 = scmp.ne.s32.totalorder %s78, %s79
      %p91 = scmp.eq.s32.totalorder %s27, 3
      %p92 = por %p90, %p91
      %p94 = scmp.ne.s32.totalorder %s79, %s93
      %p95 = scmp.eq.s32.totalorder %s27, 0
      %p96 = por %p94, %p95
      %s98 = sadd.s32 %s97, 1
      %p101 = scmp.eq.s32.totalorder %s21, 3
      %p102 = scmp.ne.s32.totalorder %s97, %s99
      %p103 = scmp.eq.s32.totalorder %s21, 0
      %p104 = por %p102, %p103
      %p105 = scmp.ne.s32.totalorder %s97, %s99
      %p106 = scmp.eq.s32.totalorder %s26, 3
      %p107 = por %p105, %p106
      %p108 = scmp.ne.s32.totalorder %s99, %s100
      %p109 = scmp.eq.s32.totalorder %s26, 0
      %p110 = por %p108, %p109
      %p111 = scmp.ne.s32.totalorder %s99, %s100
      %p112 = scmp.eq.s32.totalorder %s27, 3
      %p113 = por %p111, %p112
      %p115 = scmp.ne.s32.totalorder %s100, %s114
      %p116 = scmp.eq.s32.totalorder %s27, 0
      %p117 = por %p115, %p116
      %s119 = sadd.s32 %s118, 1
      %p122 = scmp.eq.s32.totalorder %s21, 3
      %p123 = scmp.ne.s32.totalorder %s118, %s120
      %p124 = scmp.eq.s32.totalorder %s21, 0
      %p125 = por %p123, %p124
      %p126 = scmp.ne.s32.totalorder %s118, %s120
      %p127 = scmp.eq.s32.totalorder %s26, 3
      %p128 = por %p126, %p127
      %p129 = scmp.ne.s32.totalorder %s120, %s121
      %p130 = scmp.eq.s32.totalorder %s26, 0
      %p131 = por %p129, %p130
      %p132 = scmp.ne.s32.totalorder %s120, %s121
      %p133 = scmp.eq.s32.totalorder %s27, 3
      %p134 = por %p132, %p133
      %p136 = scmp.ne.s32.totalorder %s121, %s135
      %p137 = scmp.eq.s32.totalorder %s27, 0
      %p138 = por %p136, %p137
      %s140 = sadd.s32 %s139, 1
      %p143 = scmp.eq.s32.totalorder %s21, 3
      %p144 = scmp.ne.s32.totalorder %s139, %s141
      %p145 = scmp.eq.s32.totalorder %s21, 0
      %p146 = por %p144, %p145
      %p147 = scmp.ne.s32.totalorder %s139, %s141
      %p148 = scmp.eq.s32.totalorder %s26, 3
      %p149 = por %p147, %p148
      %p150 = scmp.ne.s32.totalorder %s141, %s142
      %p151 = scmp.eq.s32.totalorder %s26, 0
      %p152 = por %p150, %p151
      %p153 = scmp.ne.s32.totalorder %s141, %s142
      %p154 = scmp.eq.s32.totalorder %s27, 3
      %p155 = por %p153, %p154
      %p157 = scmp.ne.s32.totalorder %s142, %s156
      %p158 = scmp.eq.s32.totalorder %s27, 0
      %p159 = por %p157, %p158
      %s161 = sadd.s32 %s160, 1
      %p164 = scmp.eq.s32.totalorder %s21, 3
      %p165 = scmp.ne.s32.totalorder %s160, %s162
      %p166 = scmp.eq.s32.totalorder %s21, 0
      %p167 = por %p165, %p166
      %p168 = scmp.ne.s32.totalorder %s160, %s162
      %p169 = scmp.eq.s32.totalorder %s26, 3
      %p170 = por %p168, %p169
      %p171 = scmp.ne.s32.totalorder %s162, %s163
      %p172 = scmp.eq.s32.totalorder %s26, 0
      %p173 = por %p171, %p172
      %p174 = scmp.ne.s32.totalorder %s162, %s163
      %p175 = scmp.eq.s32.totalorder %s27, 3
      %p176 = por %p174, %p175
      %p178 = scmp.ne.s32.totalorder %s163, %s177
      %p179 = scmp.eq.s32.totalorder %s27, 0
      %p180 = por %p178, %p179
      %s181 = ssub.s32 %s21, %s28
      %p182 = scmp.eq.s32.totalorder %s181, 0
      %s184 = sadd.s32 %s183, 1
      %s185 = scalar_select %p182, %s183, %s184
      %p188 = pneg %p182
      %p189 = scmp.eq.s32.totalorder %s21, 3
      %p190 = por %p188, %p189
      %p191 = scmp.ne.s32.totalorder %s183, %s186
      %p192 = scmp.eq.s32.totalorder %s21, 0
      %p193 = por %p191, %p192
      %p194 = scmp.ne.s32.totalorder %s183, %s186
      %p195 = scmp.eq.s32.totalorder %s26, 3
      %p196 = por %p194, %p195
      %p197 = scmp.ne.s32.totalorder %s186, %s187
      %p198 = scmp.eq.s32.totalorder %s26, 0
      %p199 = por %p197, %p198
      %p200 = scmp.ne.s32.totalorder %s186, %s187
      %p201 = scmp.eq.s32.totalorder %s27, 3
      %p202 = por %p200, %p201
      %p204 = scmp.ne.s32.totalorder %s187, %s203
      %p205 = scmp.eq.s32.totalorder %s27, 0
      %p206 = por %p204, %p205
      %p207 = scmp.le.s32.totalorder 1, %s21
      %p208 = scmp.lt.s32.totalorder %s21, 5
      %p209 = pnand %p207, %p208
      %p210 = pneg %p209
      // Predicated region
      $region9: #{ckdnet_forward.1} parent=5 // pred_check
        _
      $region10: #{ckdnet_forward.1} parent=5 // pred_check_branch
        %212 = sbr.rel (%p209) target = $region12
      $region11: #{ckdnet_forward.1} parent=5 // pred_region
        %s213 = ssub.s32 %s21, 1
        // Predicated region
        $region13: #{ckdnet_forward.1} parent=11 // pred_check
          %p214 = pneg %p68
        $region14: #{ckdnet_forward.1} parent=11 // pred_check_branch
          %216 = sbr.rel (%p214) target = $region16
        $region15: #{ckdnet_forward.1} parent=11 // pred_region
          _
        $region16: #{ckdnet_forward.1} parent=11 // pred_fallthru
          _
        // Predicated region
        $region17: #{ckdnet_forward.1} parent=11 // pred_check
          %p217 = pneg %p89
        $region18: #{ckdnet_forward.1} parent=11 // pred_check_branch
          %219 = sbr.rel (%p217) target = $region20
        $region19: #{ckdnet_forward.1} parent=11 // pred_region
          _
        $region20: #{ckdnet_forward.1} parent=11 // pred_fallthru
          _
        // Predicated region
        $region21: #{ckdnet_forward.1} parent=11 // pred_check
          %p220 = pneg %p110
        $region22: #{ckdnet_forward.1} parent=11 // pred_check_branch
          %222 = sbr.rel (%p220) target = $region24
        $region23: #{ckdnet_forward.1} parent=11 // pred_region
          _
        $region24: #{ckdnet_forward.1} parent=11 // pred_fallthru
          _
        // Predicated region
        $region25: #{ckdnet_forward.1} parent=11 // pred_check
          %p223 = pneg %p131
        $region26: #{ckdnet_forward.1} parent=11 // pred_check_branch
          %225 = sbr.rel (%p223) target = $region28
        $region27: #{ckdnet_forward.1} parent=11 // pred_region
          _
        $region28: #{ckdnet_forward.1} parent=11 // pred_fallthru
          _
        // Predicated region
        $region29: #{ckdnet_forward.1} parent=11 // pred_check
          %p226 = pneg %p152
        $region30: #{ckdnet_forward.1} parent=11 // pred_check_branch
          %228 = sbr.rel (%p226) target = $region32
        $region31: #{ckdnet_forward.1} parent=11 // pred_region
          _
        $region32: #{ckdnet_forward.1} parent=11 // pred_fallthru
          _
        // Predicated region
        $region33: #{ckdnet_forward.1} parent=11 // pred_check
          %p229 = pneg %p173
        $region34: #{ckdnet_forward.1} parent=11 // pred_check_branch
          %231 = sbr.rel (%p229) target = $region36
        $region35: #{ckdnet_forward.1} parent=11 // pred_region
          _
        $region36: #{ckdnet_forward.1} parent=11 // pred_fallthru
          _
      $region12: #{ckdnet_forward.1} parent=5 // pred_fallthru
        _
      %p232 = scmp.lt.s32.totalorder %s21, 4
      // Predicated region
      $region37: #{ckdnet_forward.1} parent=5 // pred_check
        %p233 = pneg %p232
      $region38: #{ckdnet_forward.1} parent=5 // pred_check_branch
        %235 = sbr.rel (%p233) target = $region40
      $region39: #{ckdnet_forward.1} parent=5 // pred_region
        // Predicated region
        $region41: #{ckdnet_forward.1} parent=39 // pred_check
          %p236 = pneg %p41
        $region42: #{ckdnet_forward.1} parent=39 // pred_check_branch
          %238 = sbr.rel (%p236) target = $region44
        $region43: #{ckdnet_forward.1} parent=39 // pred_region
          %s239 = sand.u32 %s31, 1
          %s240 = scalar_lea.sflag [#allocation4], %s239
          %s241 = sand.u32 %s31, 1
          %s242 = smul.addr %s241, 16
          %s243 = scalar_lea.vmem [#allocation3], %s242
          %s244 = smul.u32 4, %s21
          %s246 = ssub.s32 256, 256
          %247 = vsyncadd %s240, %s246
          %s248 = smul.addr %s244, 64
          %s249 = scalar_lea.hbm %s0, %s248
          %s251 = sshll.u32 %s243, 4
          %s252 = int_to_ptr.vmem [resolvable:$true] %s251
          %254 = dma.hbm_to_vmem [thread:$0]  %s249, 256, %s252, %s240
        $region44: #{ckdnet_forward.1} parent=39 // pred_fallthru
          _
      $region40: #{ckdnet_forward.1} parent=5 // pred_fallthru
        _
      %p255 = scmp.le.s32.totalorder 1, %s21
      %p256 = scmp.lt.s32.totalorder %s21, 5
      %p257 = pnand %p255, %p256
      %p258 = pneg %p257
      // Predicated region
      $region45: #{ckdnet_forward.1} parent=5 // pred_check
        _
      $region46: #{ckdnet_forward.1} parent=5 // pred_check_branch
        %260 = sbr.rel (%p257) target = $region48
      $region47: #{ckdnet_forward.1} parent=5 // pred_region
        %s261 = ssub.s32 %s21, 1
        %s262 = sand.u32 %s34, 1
        %s263 = scalar_lea.sflag [#allocation4], %s262
        %s264 = sand.u32 %s34, 1
        %s265 = smul.addr %s264, 16
        %s266 = scalar_lea.vmem [#allocation3], %s265
        // Predicated region
        $region49: #{ckdnet_forward.1} parent=47 // pred_check
          %p267 = pneg %p47
        $region50: #{ckdnet_forward.1} parent=47 // pred_check_branch
          %269 = sbr.rel (%p267) target = $region52
        $region51: #{ckdnet_forward.1} parent=47 // pred_region
          %270 = dma.done %s263, 256
        $region52: #{ckdnet_forward.1} parent=47 // pred_fallthru
          _
        %s271 = sand.u32 %s34, 1
        %s272 = scalar_lea.sflag [#allocation4], %s271
        %s273 = sand.u32 %s34, 1
        %s274 = smul.addr %s273, 16
        %s275 = scalar_lea.vmem [#allocation3], %s274
        %p276 = pneg %p47
        %p277 = pneg %p44
        %p278 = pneg %p68
        %p279 = pneg %p65
        %p280 = pneg %p89
        %p281 = pneg %p86
        %p282 = pneg %p110
        %p283 = pneg %p107
        %p284 = pneg %p131
        %p285 = pneg %p128
        %p286 = pneg %p152
        %p287 = pneg %p149
        %p288 = pneg %p173
        %p289 = pneg %p170
        %p290 = pneg %p199
        %p291 = pneg %p196
        %s292 = sand.u32 %s186, 1
        %s293 = scalar_lea.sflag [#allocation5], %s292
        %s294 = sand.u32 %s186, 1
        %s295 = smul.addr %s294, 4
        %s296 = scalar_lea.vmem [#allocation6], %s295
        %s297 = smul.u32 4, %s26
        %s298 = smul.u32 4, %s26
        %v299 = vld [vmem:[%s266] sm:$0x77]
        %v300 = vld [vmem:[%s266 + $0x8] sm:$0x77]
        %v301 = vld [vmem:[%s1] sm:$0xff]
        %v302 = vld [vmem:[%s1 + $0x8] sm:$0xff]
        %v303 = vld [vmem:[%s2] sm:$0xff]
        %v304 = vld [vmem:[%s2 + $0x8] sm:$0xff]
        %306 = vset.pattern.permute.xlu0 0
        %307 = vperm.xlu0 %306, %v303
        %v308 = vpop.permute.xlu0 %307
        %311 = vset.pattern.permute.xlu0 0
        %312 = vperm.xlu0 %311, %v304
        %v313 = vpop.permute.xlu0 %312
        %v317 = vcombine.high %v299, %v299
        %v318 = vcombine.high %v300, %v300
        %vm319 = vcmask 23552
        %v321 = vsel %vm319, %v301, 0
        %v324 = vsel %vm319, %v302, 0
        %vm326 = vcmask 1042432
        %v327 = vsel %vm326, %v299, 0
        %v329 = vsel %vm326, %v317, 0
        %v331 = vsel %vm326, %v300, 0
        %v333 = vsel %vm326, %v318, 0
        %335 = vmatprep.subr.mxu0 %v329
        %336 = vmatpush1.msra.mxu0 %v327
        %337 = vmatprep.subr.mxu0 0.0
        %338 = vmatpush1.msra.mxu0 0.0
        %339 = vmatprep.subr.mxu0 0.0
        %340 = vmatpush1.msra.mxu0 0.0
        %341 = vmatprep.subr.mxu0 0.0
        %342 = vmatpush1.msra.mxu0 0.0
        %343 = vmatprep.subr.mxu0 0.0
        %344 = vmatpush1.msra.mxu0 0.0
        %345 = vmatprep.subr.mxu0 0.0
        %346 = vmatpush1.msra.mxu0 0.0
        %347 = vmatprep.subr.mxu0 0.0
        %348 = vmatpush1.msra.mxu0 0.0
        %349 = vmatprep.subr.mxu0 0.0
        %350 = vmatpush1.msra.mxu0 0.0
        %351 = vmatprep.subr.mxu0 0.0
        %352 = vmatpush1.msra.mxu0 0.0
        %353 = vmatprep.subr.mxu0 0.0
        %354 = vmatpush1.msra.mxu0 0.0
        %355 = vmatprep.subr.mxu0 0.0
        %356 = vmatpush1.msra.mxu0 0.0
        %357 = vmatprep.subr.mxu0 0.0
        %358 = vmatpush1.msra.mxu0 0.0
        %359 = vmatprep.subr.mxu0 0.0
        %360 = vmatpush1.msra.mxu0 0.0
        %361 = vmatprep.subr.mxu0 0.0
        %362 = vmatpush1.msra.mxu0 0.0
        %363 = vmatprep.subr.mxu0 0.0
        %364 = vmatpush1.msra.mxu0 0.0
        %365 = vmatprep.subr.mxu0 0.0
        %366 = vmatpush1.msra.mxu0 0.0
        %367 = vmatprep.subr.mxu0 0.0
        %368 = vmatpush1.msra.mxu0 0.0
        %369 = vmatprep.subr.mxu0 0.0
        %370 = vmatpush1.msra.mxu0 0.0
        %371 = vmatprep.subr.mxu0 0.0
        %372 = vmatpush1.msra.mxu0 0.0
        %373 = vmatprep.subr.mxu0 0.0
        %374 = vmatpush1.msra.mxu0 0.0
        %375 = vmatprep.subr.mxu0 0.0
        %376 = vmatpush1.msra.mxu0 0.0
        %377 = vmatprep.subr.mxu0 0.0
        %378 = vmatpush1.msra.mxu0 0.0
        %379 = vmatprep.subr.mxu0 0.0
        %380 = vmatpush1.msra.mxu0 0.0
        %381 = vmatprep.subr.mxu0 0.0
        %382 = vmatpush1.msra.mxu0 0.0
        %383 = vmatprep.subr.mxu0 0.0
        %384 = vmatpush1.msra.mxu0 0.0
        %385 = vmatprep.subr.mxu0 0.0
        %386 = vmatpush1.msra.mxu0 0.0
        %387 = vmatprep.subr.mxu0 0.0
        %388 = vmatpush1.msra.mxu0 0.0
        %389 = vmatprep.subr.mxu0 0.0
        %390 = vmatpush1.msra.mxu0 0.0
        %391 = vmatprep.subr.mxu0 0.0
        %392 = vmatpush1.msra.mxu0 0.0
        %393 = vmatprep.subr.mxu0 0.0
        %394 = vmatpush1.msra.mxu0 0.0
        %395 = vmatprep.subr.mxu0 0.0
        %396 = vmatpush1.msra.mxu0 0.0
        %397 = vmatprep.subr.mxu0 0.0
        %398 = vmatpush1.msra.mxu0 0.0
        %399 = vmatprep.mubr.f32.mxu0 0.0
        %400 = vmatmul.mubr.f32.gmra.mrb[0].mxu0 %v321
        %v401 = vpop.f32.mrb[0].mxu0
        %v402 = vadd.f32 %v308, %v401
        %v403 = vpop.f32.mrb[0].mxu0
        %v404 = vadd.f32 %v308, %v403
        %405 = vmatprep.mubr.f32.mxu0 0.0
        %406 = vmatmul.mubr.f32.gmra.mrb[0].mxu0 %v324
        %v407 = vpop.f32.mrb[0].mxu0
        %v408 = vadd.f32 %v313, %v407
        %v409 = vpop.f32.mrb[0].mxu0
        %v410 = vadd.f32 %v313, %v409
        %411 = vdwg.mxu0
        %412 = vmatprep.subr.mxu0 %v333
        %413 = vmatpush1.msra.mxu0 %v331
        %414 = vmatprep.subr.mxu0 0.0
        %415 = vmatpush1.msra.mxu0 0.0
        %416 = vmatprep.subr.mxu0 0.0
        %417 = vmatpush1.msra.mxu0 0.0
        %418 = vmatprep.subr.mxu0 0.0
        %419 = vmatpush1.msra.mxu0 0.0
        %420 = vmatprep.subr.mxu0 0.0
        %421 = vmatpush1.msra.mxu0 0.0
        %422 = vmatprep.subr.mxu0 0.0
        %423 = vmatpush1.msra.mxu0 0.0
        %424 = vmatprep.subr.mxu0 0.0
        %425 = vmatpush1.msra.mxu0 0.0
        %426 = vmatprep.subr.mxu0 0.0
        %427 = vmatpush1.msra.mxu0 0.0
        %428 = vmatprep.subr.mxu0 0.0
        %429 = vmatpush1.msra.mxu0 0.0
        %430 = vmatprep.subr.mxu0 0.0
        %431 = vmatpush1.msra.mxu0 0.0
        %432 = vmatprep.subr.mxu0 0.0
        %433 = vmatpush1.msra.mxu0 0.0
        %434 = vmatprep.subr.mxu0 0.0
        %435 = vmatpush1.msra.mxu0 0.0
        %436 = vmatprep.subr.mxu0 0.0
        %437 = vmatpush1.msra.mxu0 0.0
        %438 = vmatprep.subr.mxu0 0.0
        %439 = vmatpush1.msra.mxu0 0.0
        %440 = vmatprep.subr.mxu0 0.0
        %441 = vmatpush1.msra.mxu0 0.0
        %442 = vmatprep.subr.mxu0 0.0
        %443 = vmatpush1.msra.mxu0 0.0
        %444 = vmatprep.subr.mxu0 0.0
        %445 = vmatpush1.msra.mxu0 0.0
        %446 = vmatprep.subr.mxu0 0.0
        %447 = vmatpush1.msra.mxu0 0.0
        %448 = vmatprep.subr.mxu0 0.0
        %449 = vmatpush1.msra.mxu0 0.0
        %450 = vmatprep.subr.mxu0 0.0
        %451 = vmatpush1.msra.mxu0 0.0
        %452 = vmatprep.subr.mxu0 0.0
        %453 = vmatpush1.msra.mxu0 0.0
        %454 = vmatprep.subr.mxu0 0.0
        %455 = vmatpush1.msra.mxu0 0.0
        %456 = vmatprep.subr.mxu0 0.0
        %457 = vmatpush1.msra.mxu0 0.0
        %458 = vmatprep.subr.mxu0 0.0
        %459 = vmatpush1.msra.mxu0 0.0
        %460 = vmatprep.subr.mxu0 0.0
        %461 = vmatpush1.msra.mxu0 0.0
        %462 = vmatprep.subr.mxu0 0.0
        %463 = vmatpush1.msra.mxu0 0.0
        %464 = vmatprep.subr.mxu0 0.0
        %465 = vmatpush1.msra.mxu0 0.0
        %466 = vmatprep.subr.mxu0 0.0
        %467 = vmatpush1.msra.mxu0 0.0
        %468 = vmatprep.subr.mxu0 0.0
        %469 = vmatpush1.msra.mxu0 0.0
        %470 = vmatprep.subr.mxu0 0.0
        %471 = vmatpush1.msra.mxu0 0.0
        %472 = vmatprep.subr.mxu0 0.0
        %473 = vmatpush1.msra.mxu0 0.0
        %474 = vmatprep.subr.mxu0 0.0
        %475 = vmatpush1.msra.mxu0 0.0
        %476 = vmatprep.mubr.f32.mxu0 0.0
        %477 = vmatmul.mubr.f32.gmra.mrb[0].mxu0 %v321
        %v478 = vpop.f32.mrb[0].mxu0
        %v479 = vadd.f32 %v308, %v478
        %v480 = vpop.f32.mrb[0].mxu0
        %v481 = vadd.f32 %v308, %v480
        %482 = vmatprep.mubr.f32.mxu0 0.0
        %483 = vmatmul.mubr.f32.gmra.mrb[0].mxu0 %v324
        %v484 = vpop.f32.mrb[0].mxu0
        %v485 = vadd.f32 %v313, %v484
        %v486 = vpop.f32.mrb[0].mxu0
        %v487 = vadd.f32 %v313, %v486
        %488 = vdwg.mxu0
        %v489 = vmax.f32 %v402, 0.0
        %v490 = vmax.f32 %v404, 0.0
        %v491 = vmax.f32 %v479, 0.0
        %v492 = vmax.f32 %v481, 0.0
        %v493 = vmax.f32 %v408, 0.0
        %v494 = vmax.f32 %v410, 0.0
        %v495 = vmax.f32 %v485, 0.0
        %v496 = vmax.f32 %v487, 0.0
        %v497 = vld [vmem:[%s3] sm:$0xff]
        %v498 = vld [vmem:[%s4] sm:$0xff]
        %500 = vset.pattern.permute.xlu0 0
        %501 = vperm.xlu0 %500, %v498
        %v502 = vpop.permute.xlu0 %501
        %vm504 = vcmask 130048
        %v506 = vsel %vm504, %v497, 0
        %508 = vmatprep.subr.mxu0 %v490
        %509 = vmatpush1.msra.mxu0 %v489
        %510 = vmatprep.subr.mxu0 %v494
        %511 = vmatpush1.msra.mxu0 %v493
        %512 = vmatprep.subr.mxu0 0.0
        %513 = vmatpush1.msra.mxu0 0.0
        %514 = vmatprep.subr.mxu0 0.0
        %515 = vmatpush1.msra.mxu0 0.0
        %516 = vmatprep.subr.mxu0 0.0
        %517 = vmatpush1.msra.mxu0 0.0
        %518 = vmatprep.subr.mxu0 0.0
        %519 = vmatpush1.msra.mxu0 0.0
        %520 = vmatprep.subr.mxu0 0.0
        %521 = vmatpush1.msra.mxu0 0.0
        %522 = vmatprep.subr.mxu0 0.0
        %523 = vmatpush1.msra.mxu0 0.0
        %524 = vmatprep.subr.mxu0 0.0
        %525 = vmatpush1.msra.mxu0 0.0
        %526 = vmatprep.subr.mxu0 0.0
        %527 = vmatpush1.msra.mxu0 0.0
        %528 = vmatprep.subr.mxu0 0.0
        %529 = vmatpush1.msra.mxu0 0.0
        %530 = vmatprep.subr.mxu0 0.0
        %531 = vmatpush1.msra.mxu0 0.0
        %532 = vmatprep.subr.mxu0 0.0
        %533 = vmatpush1.msra.mxu0 0.0
        %534 = vmatprep.subr.mxu0 0.0
        %535 = vmatpush1.msra.mxu0 0.0
        %536 = vmatprep.subr.mxu0 0.0
        %537 = vmatpush1.msra.mxu0 0.0
        %538 = vmatprep.subr.mxu0 0.0
        %539 = vmatpush1.msra.mxu0 0.0
        %540 = vmatprep.subr.mxu0 0.0
        %541 = vmatpush1.msra.mxu0 0.0
        %542 = vmatprep.subr.mxu0 0.0
        %543 = vmatpush1.msra.mxu0 0.0
        %544 = vmatprep.subr.mxu0 0.0
        %545 = vmatpush1.msra.mxu0 0.0
        %546 = vmatprep.subr.mxu0 0.0
        %547 = vmatpush1.msra.mxu0 0.0
        %548 = vmatprep.subr.mxu0 0.0
        %549 = vmatpush1.msra.mxu0 0.0
        %550 = vmatprep.subr.mxu0 0.0
        %551 = vmatpush1.msra.mxu0 0.0
        %552 = vmatprep.subr.mxu0 0.0
        %553 = vmatpush1.msra.mxu0 0.0
        %554 = vmatprep.subr.mxu0 0.0
        %555 = vmatpush1.msra.mxu0 0.0
        %556 = vmatprep.subr.mxu0 0.0
        %557 = vmatpush1.msra.mxu0 0.0
        %558 = vmatprep.subr.mxu0 0.0
        %559 = vmatpush1.msra.mxu0 0.0
        %560 = vmatprep.subr.mxu0 0.0
        %561 = vmatpush1.msra.mxu0 0.0
        %562 = vmatprep.subr.mxu0 0.0
        %563 = vmatpush1.msra.mxu0 0.0
        %564 = vmatprep.subr.mxu0 0.0
        %565 = vmatpush1.msra.mxu0 0.0
        %566 = vmatprep.subr.mxu0 0.0
        %567 = vmatpush1.msra.mxu0 0.0
        %568 = vmatprep.subr.mxu0 0.0
        %569 = vmatpush1.msra.mxu0 0.0
        %570 = vmatprep.subr.mxu0 0.0
        %571 = vmatpush1.msra.mxu0 0.0
        %572 = vmatprep.mubr.f32.mxu0 0.0
        %573 = vmatmul.mubr.f32.gmra.mrb[0].mxu0 %v506
        %v574 = vpop.f32.mrb[0].mxu0
        %v575 = vadd.f32 %v502, %v574
        %v576 = vpop.f32.mrb[0].mxu0
        %v577 = vadd.f32 %v502, %v576
        %578 = vdwg.mxu0
        %579 = vmatprep.subr.mxu0 %v492
        %580 = vmatpush1.msra.mxu0 %v491
        %581 = vmatprep.subr.mxu0 %v496
        %582 = vmatpush1.msra.mxu0 %v495
        %583 = vmatprep.subr.mxu0 0.0
        %584 = vmatpush1.msra.mxu0 0.0
        %585 = vmatprep.subr.mxu0 0.0
        %586 = vmatpush1.msra.mxu0 0.0
        %587 = vmatprep.subr.mxu0 0.0
        %588 = vmatpush1.msra.mxu0 0.0
        %589 = vmatprep.subr.mxu0 0.0
        %590 = vmatpush1.msra.mxu0 0.0
        %591 = vmatprep.subr.mxu0 0.0
        %592 = vmatpush1.msra.mxu0 0.0
        %593 = vmatprep.subr.mxu0 0.0
        %594 = vmatpush1.msra.mxu0 0.0
        %595 = vmatprep.subr.mxu0 0.0
        %596 = vmatpush1.msra.mxu0 0.0
        %597 = vmatprep.subr.mxu0 0.0
        %598 = vmatpush1.msra.mxu0 0.0
        %599 = vmatprep.subr.mxu0 0.0
        %600 = vmatpush1.msra.mxu0 0.0
        %601 = vmatprep.subr.mxu0 0.0
        %602 = vmatpush1.msra.mxu0 0.0
        %603 = vmatprep.subr.mxu0 0.0
        %604 = vmatpush1.msra.mxu0 0.0
        %605 = vmatprep.subr.mxu0 0.0
        %606 = vmatpush1.msra.mxu0 0.0
        %607 = vmatprep.subr.mxu0 0.0
        %608 = vmatpush1.msra.mxu0 0.0
        %609 = vmatprep.subr.mxu0 0.0
        %610 = vmatpush1.msra.mxu0 0.0
        %611 = vmatprep.subr.mxu0 0.0
        %612 = vmatpush1.msra.mxu0 0.0
        %613 = vmatprep.subr.mxu0 0.0
        %614 = vmatpush1.msra.mxu0 0.0
        %615 = vmatprep.subr.mxu0 0.0
        %616 = vmatpush1.msra.mxu0 0.0
        %617 = vmatprep.subr.mxu0 0.0
        %618 = vmatpush1.msra.mxu0 0.0
        %619 = vmatprep.subr.mxu0 0.0
        %620 = vmatpush1.msra.mxu0 0.0
        %621 = vmatprep.subr.mxu0 0.0
        %622 = vmatpush1.msra.mxu0 0.0
        %623 = vmatprep.subr.mxu0 0.0
        %624 = vmatpush1.msra.mxu0 0.0
        %625 = vmatprep.subr.mxu0 0.0
        %626 = vmatpush1.msra.mxu0 0.0
        %627 = vmatprep.subr.mxu0 0.0
        %628 = vmatpush1.msra.mxu0 0.0
        %629 = vmatprep.subr.mxu0 0.0
        %630 = vmatpush1.msra.mxu0 0.0
        %631 = vmatprep.subr.mxu0 0.0
        %632 = vmatpush1.msra.mxu0 0.0
        %633 = vmatprep.subr.mxu0 0.0
        %634 = vmatpush1.msra.mxu0 0.0
        %635 = vmatprep.subr.mxu0 0.0
        %636 = vmatpush1.msra.mxu0 0.0
        %637 = vmatprep.subr.mxu0 0.0
        %638 = vmatpush1.msra.mxu0 0.0
        %639 = vmatprep.subr.mxu0 0.0
        %640 = vmatpush1.msra.mxu0 0.0
        %641 = vmatprep.subr.mxu0 0.0
        %642 = vmatpush1.msra.mxu0 0.0
        %643 = vmatprep.mubr.f32.mxu0 0.0
        %644 = vmatmul.mubr.f32.gmra.mrb[0].mxu0 %v506
        %v645 = vpop.f32.mrb[0].mxu0
        %v646 = vadd.f32 %v502, %v645
        %v647 = vpop.f32.mrb[0].mxu0
        %v648 = vadd.f32 %v502, %v647
        %649 = vdwg.mxu0
        %v650 = vmax.f32 %v575, 0.0
        %v651 = vmax.f32 %v577, 0.0
        %v652 = vmax.f32 %v646, 0.0
        %v653 = vmax.f32 %v648, 0.0
        %v654 = vld [vmem:[%s5] sm:$0x1]
        %v655 = vld [vmem:[#allocation2] sm:$0x1]
        %657 = vset.pattern.permute.xlu0 0
        %658 = vperm.xlu0 %657, %v655
        %v659 = vpop.permute.xlu0 %658
        %v661 = vlaneseq
        %v662 = vshrl.u32 %v661, 7
        %v663 = vsub.s32 0, %v662
        %v664 = vrot.slane %v659, %v663
        %vm665 = vcmask 64512
        %v667 = vsel %vm665, %v654, 0
        %669 = vmatprep.subr.mxu0 %v651
        %670 = vmatpush1.msra.mxu0 %v650
        %671 = vmatprep.subr.mxu0 0.0
        %672 = vmatpush1.msra.mxu0 0.0
        %673 = vmatprep.subr.mxu0 0.0
        %674 = vmatpush1.msra.mxu0 0.0
        %675 = vmatprep.subr.mxu0 0.0
        %676 = vmatpush1.msra.mxu0 0.0
        %677 = vmatprep.subr.mxu0 0.0
        %678 = vmatpush1.msra.mxu0 0.0
        %679 = vmatprep.subr.mxu0 0.0
        %680 = vmatpush1.msra.mxu0 0.0
        %681 = vmatprep.subr.mxu0 0.0
        %682 = vmatpush1.msra.mxu0 0.0
        %683 = vmatprep.subr.mxu0 0.0
        %684 = vmatpush1.msra.mxu0 0.0
        %685 = vmatprep.subr.mxu0 0.0
        %686 = vmatpush1.msra.mxu0 0.0
        %687 = vmatprep.subr.mxu0 0.0
        %688 = vmatpush1.msra.mxu0 0.0
        %689 = vmatprep.subr.mxu0 0.0
        %690 = vmatpush1.msra.mxu0 0.0
        %691 = vmatprep.subr.mxu0 0.0
        %692 = vmatpush1.msra.mxu0 0.0
        %693 = vmatprep.subr.mxu0 0.0
        %694 = vmatpush1.msra.mxu0 0.0
        %695 = vmatprep.subr.mxu0 0.0
        %696 = vmatpush1.msra.mxu0 0.0
        %697 = vmatprep.subr.mxu0 0.0
        %698 = vmatpush1.msra.mxu0 0.0
        %699 = vmatprep.subr.mxu0 0.0
        %700 = vmatpush1.msra.mxu0 0.0
        %701 = vmatprep.subr.mxu0 0.0
        %702 = vmatpush1.msra.mxu0 0.0
        %703 = vmatprep.subr.mxu0 0.0
        %704 = vmatpush1.msra.mxu0 0.0
        %705 = vmatprep.subr.mxu0 0.0
        %706 = vmatpush1.msra.mxu0 0.0
        %707 = vmatprep.subr.mxu0 0.0
        %708 = vmatpush1.msra.mxu0 0.0
        %709 = vmatprep.subr.mxu0 0.0
        %710 = vmatpush1.msra.mxu0 0.0
        %711 = vmatprep.subr.mxu0 0.0
        %712 = vmatpush1.msra.mxu0 0.0
        %713 = vmatprep.subr.mxu0 0.0
        %714 = vmatpush1.msra.mxu0 0.0
        %715 = vmatprep.subr.mxu0 0.0
        %716 = vmatpush1.msra.mxu0 0.0
        %717 = vmatprep.subr.mxu0 0.0
        %718 = vmatpush1.msra.mxu0 0.0
        %719 = vmatprep.subr.mxu0 0.0
        %720 = vmatpush1.msra.mxu0 0.0
        %721 = vmatprep.subr.mxu0 0.0
        %722 = vmatpush1.msra.mxu0 0.0
        %723 = vmatprep.subr.mxu0 0.0
        %724 = vmatpush1.msra.mxu0 0.0
        %725 = vmatprep.subr.mxu0 0.0
        %726 = vmatpush1.msra.mxu0 0.0
        %727 = vmatprep.subr.mxu0 0.0
        %728 = vmatpush1.msra.mxu0 0.0
        %729 = vmatprep.subr.mxu0 0.0
        %730 = vmatpush1.msra.mxu0 0.0
        %731 = vmatprep.subr.mxu0 0.0
        %732 = vmatpush1.msra.mxu0 0.0
        %733 = vmatprep.mubr.f32.mxu0 0.0
        %734 = vmatmul.mubr.f32.gmra.mrb[0].mxu0 %v667
        %v735 = vpop.f32.mrb[0].mxu0
        %v736 = vadd.f32 %v664, %v735
        %v737 = vpop.f32.mrb[0].mxu0
        %v738 = vadd.f32 %v664, %v737
        %739 = vdwg.mxu0
        %740 = vmatprep.subr.mxu0 %v653
        %741 = vmatpush1.msra.mxu0 %v652
        %742 = vmatprep.subr.mxu0 0.0
        %743 = vmatpush1.msra.mxu0 0.0
        %744 = vmatprep.subr.mxu0 0.0
        %745 = vmatpush1.msra.mxu0 0.0
        %746 = vmatprep.subr.mxu0 0.0
        %747 = vmatpush1.msra.mxu0 0.0
        %748 = vmatprep.subr.mxu0 0.0
        %749 = vmatpush1.msra.mxu0 0.0
        %750 = vmatprep.subr.mxu0 0.0
        %751 = vmatpush1.msra.mxu0 0.0
        %752 = vmatprep.subr.mxu0 0.0
        %753 = vmatpush1.msra.mxu0 0.0
        %754 = vmatprep.subr.mxu0 0.0
        %755 = vmatpush1.msra.mxu0 0.0
        %756 = vmatprep.subr.mxu0 0.0
        %757 = vmatpush1.msra.mxu0 0.0
        %758 = vmatprep.subr.mxu0 0.0
        %759 = vmatpush1.msra.mxu0 0.0
        %760 = vmatprep.subr.mxu0 0.0
        %761 = vmatpush1.msra.mxu0 0.0
        %762 = vmatprep.subr.mxu0 0.0
        %763 = vmatpush1.msra.mxu0 0.0
        %764 = vmatprep.subr.mxu0 0.0
        %765 = vmatpush1.msra.mxu0 0.0
        %766 = vmatprep.subr.mxu0 0.0
        %767 = vmatpush1.msra.mxu0 0.0
        %768 = vmatprep.subr.mxu0 0.0
        %769 = vmatpush1.msra.mxu0 0.0
        %770 = vmatprep.subr.mxu0 0.0
        %771 = vmatpush1.msra.mxu0 0.0
        %772 = vmatprep.subr.mxu0 0.0
        %773 = vmatpush1.msra.mxu0 0.0
        %774 = vmatprep.subr.mxu0 0.0
        %775 = vmatpush1.msra.mxu0 0.0
        %776 = vmatprep.subr.mxu0 0.0
        %777 = vmatpush1.msra.mxu0 0.0
        %778 = vmatprep.subr.mxu0 0.0
        %779 = vmatpush1.msra.mxu0 0.0
        %780 = vmatprep.subr.mxu0 0.0
        %781 = vmatpush1.msra.mxu0 0.0
        %782 = vmatprep.subr.mxu0 0.0
        %783 = vmatpush1.msra.mxu0 0.0
        %784 = vmatprep.subr.mxu0 0.0
        %785 = vmatpush1.msra.mxu0 0.0
        %786 = vmatprep.subr.mxu0 0.0
        %787 = vmatpush1.msra.mxu0 0.0
        %788 = vmatprep.subr.mxu0 0.0
        %789 = vmatpush1.msra.mxu0 0.0
        %790 = vmatprep.subr.mxu0 0.0
        %791 = vmatpush1.msra.mxu0 0.0
        %792 = vmatprep.subr.mxu0 0.0
        %793 = vmatpush1.msra.mxu0 0.0
        %794 = vmatprep.subr.mxu0 0.0
        %795 = vmatpush1.msra.mxu0 0.0
        %796 = vmatprep.subr.mxu0 0.0
        %797 = vmatpush1.msra.mxu0 0.0
        %798 = vmatprep.subr.mxu0 0.0
        %799 = vmatpush1.msra.mxu0 0.0
        %800 = vmatprep.subr.mxu0 0.0
        %801 = vmatpush1.msra.mxu0 0.0
        %802 = vmatprep.subr.mxu0 0.0
        %803 = vmatpush1.msra.mxu0 0.0
        %804 = vmatprep.mubr.f32.mxu0 0.0
        %805 = vmatmul.mubr.f32.gmra.mrb[0].mxu0 %v667
        %v806 = vpop.f32.mrb[0].mxu0
        %v807 = vadd.f32 %v664, %v806
        %v808 = vpop.f32.mrb[0].mxu0
        %v809 = vadd.f32 %v664, %v808
        %810 = vdwg.mxu0
        %v811 = vxor.u32 %v736, 2147483648
        %v812 = vxor.u32 %v738, 2147483648
        %v813 = vxor.u32 %v807, 2147483648
        %v814 = vxor.u32 %v809, 2147483648
        %v815 = vmul.f32 %v811, 1.442695
        %v816 = vpow.pop %v815
        %v817 = vmul.f32 %v812, 1.442695
        %v818 = vpow.pop %v817
        %v819 = vmul.f32 %v813, 1.442695
        %v820 = vpow.pop %v819
        %v821 = vmul.f32 %v814, 1.442695
        %v822 = vpow.pop %v821
        %v823 = vadd.f32 %v816, 1.0
        %v824 = vadd.f32 %v818, 1.0
        %v825 = vadd.f32 %v820, 1.0
        %v826 = vadd.f32 %v822, 1.0
        %v827 = vrcp.pop %v823
        %v828 = vmul.f32 1.0, %v827
        %v829 = vrcp.pop %v824
        %v830 = vmul.f32 1.0, %v829
        %v831 = vrcp.pop %v825
        %v832 = vmul.f32 1.0, %v831
        %v833 = vrcp.pop %v826
        %v834 = vmul.f32 1.0, %v833
        %v839 = vcombine.low %v828, %v830
        %v840 = vcombine.low %v832, %v834
        %v842 = vunpack.c.l.s4 1966171168
        %v843 = vunpack.c.0.s8 %v842
        %v844 = vlaneseq
        %v845 = vshrl.u32 %v844, 7
        %v846 = vsub.s32 %v843, %v845
        %v847 = vrot.slane %v839, %v846
        %v849 = vunpack.c.l.s4 1966171168
        %v850 = vunpack.c.0.s8 %v849
        %v851 = vlaneseq
        %v852 = vshrl.u32 %v851, 7
        %v853 = vsub.s32 %v850, %v852
        %v854 = vrot.slane %v840, %v853
        %v855 = vcombine.low %v847, %v854
        %v857 = vunpack.c.l.s4 1966171168
        %v858 = vunpack.c.0.s8 %v857
        %v859 = vlaneseq
        %v860 = vshrl.u32 %v859, 7
        %v861 = vsub.s32 %v858, %v860
        %v862 = vrot.slane %v855, %v861
        %v864 = vlaneseq
        %vm865 = vcmp.ge.s32.totalorder %v864, 0
        %vm866 = vcmp.lt.s32.totalorder %v864, 512
        %vm867 = vmand %vm865, %vm866
        %868 = vst.msk [vmem:[%s296] sm:$0xf] %vm867, %v862
        %s869 = sand.u32 %s186, 1
        %s870 = scalar_lea.sflag [#allocation5], %s869
        %s871 = sand.u32 %s186, 1
        %s872 = smul.addr %s871, 4
        %s873 = scalar_lea.vmem [#allocation6], %s872
        // Predicated region
        $region53: #{ckdnet_forward.1} parent=47 // pred_check
          %p874 = pneg %p196
        $region54: #{ckdnet_forward.1} parent=47 // pred_check_branch
          %876 = sbr.rel (%p874) target = $region56
        $region55: #{ckdnet_forward.1} parent=47 // pred_region
          %s877 = smul.u32 4, %s26
          %s879 = ssub.s32 64, 64
          %880 = vsyncadd %s870, %s879
          %s881 = smul.addr %s877, 16
          %s882 = scalar_lea.hbm %s7, %s881
          %s884 = sshll.u32 %s873, 4
          %s885 = int_to_ptr.vmem [resolvable:$true] %s884
          %887 = dma.vmem_to_hbm [thread:$0]  %s885, 64, %s882, %s870
        $region56: #{ckdnet_forward.1} parent=47 // pred_fallthru
          _
      $region48: #{ckdnet_forward.1} parent=5 // pred_fallthru
        _
      %p888 = scmp.le.s32.totalorder 2, %s21
      // Predicated region
      $region57: #{ckdnet_forward.1} parent=5 // pred_check
        %p889 = pneg %p888
      $region58: #{ckdnet_forward.1} parent=5 // pred_check_branch
        %891 = sbr.rel (%p889) target = $region60
      $region59: #{ckdnet_forward.1} parent=5 // pred_region
        %s892 = ssub.s32 %s21, 2
        // Predicated region
        $region61: #{ckdnet_forward.1} parent=59 // pred_check
          %p893 = pneg %p202
        $region62: #{ckdnet_forward.1} parent=59 // pred_check_branch
          %895 = sbr.rel (%p893) target = $region64
        $region63: #{ckdnet_forward.1} parent=59 // pred_region
          %s896 = sand.u32 %s187, 1
          %s897 = scalar_lea.sflag [#allocation5], %s896
          %s898 = sand.u32 %s187, 1
          %s899 = smul.addr %s898, 4
          %s900 = scalar_lea.vmem [#allocation6], %s899
          %901 = dma.done %s897, 64
        $region64: #{ckdnet_forward.1} parent=59 // pred_fallthru
          _
      $region60: #{ckdnet_forward.1} parent=5 // pred_fallthru
        _
    $region6: #{ckdnet_forward.1} parent=1 // loop_footer
      %s25 = sadd.s32 1, %s21
    $region7: #{ckdnet_forward.1} parent=1 // loop_footer_branch
      %20 = sbr.rel target = $region3
    $region8: #{ckdnet_forward.1} parent=1 // loop_exit
      _
    %902 = vsyncpa [#allocation4], 1
    %s903 = scalar_lea.sflag [#allocation4], 1
    %904 = vsyncpa %s903, 1
    %905 = vsyncpa [#allocation5], 1
    %s906 = scalar_lea.sflag [#allocation5], 1
    %907 = vsyncpa %s906, 1

</llo_original>
